<compile_context>
chip_gen: v7x
topology: tpu7x:2x2x1
jax: 0.10.0
libtpu: 0.0.40
codegen_flags: <defaults>
</compile_context>

<pallas_src>
import jax
import jax.numpy as jnp
from jax.experimental import pallas as pl
from jax.experimental.pallas import tpu as pltpu


# ---------------------------------------------------------------------------
# Kernel
# ---------------------------------------------------------------------------
def _extract_residual_kernel(x_ref, w1_ref, b1_ref, w2_ref, b2_ref, o_ref):
    """One (frame-group, pixel-tile) block, channels on sublanes / pixels on lanes.

    x_ref:  (1, BC, TL) f32   BC = bf*C channels (bf frames stacked), TL pixels
    w*_ref: (BC, BC)    bf16  block-diagonal conv1x1 weights, (out_ch, in_ch)
    b*_ref: (BC, 1)     f32   biases (broadcast along the lane axis)
    o_ref:  (1, BC, TL) f32   out = conv2(lrelu(conv1(x))) + x
    """
    x = x_ref[0]                                                      # (BC, TL) f32
    h = jnp.dot(w1_ref[...], x.astype(jnp.bfloat16),
                preferred_element_type=jnp.float32) + b1_ref[...]
    h = jnp.maximum(h, 0.1 * h)                                       # LeakyReLU(0.1)
    y = jnp.dot(w2_ref[...], h.astype(jnp.bfloat16),
                preferred_element_type=jnp.float32) + b2_ref[...]
    o_ref[0] = (y + x).astype(o_ref.dtype)                            # extractor(x) + x


# ---------------------------------------------------------------------------
# Tiling selection
# ---------------------------------------------------------------------------
_TARGET_BLOCK_BYTES = 2 * 1024 * 1024   # per-buffer block target; 2x(in)+2x(out)
                                        # double-buffered stays < v5e's 16 MiB scoped VMEM


def _choose_tiling(f, c, l, bf_max, block_bytes):
    """Pick (bf, tile_l).

    bf: frames batched per block (must divide F -> no remainder call needed).
    tile_l: lane tile (multiple of 128, or the full L) sized toward block_bytes.
    Prefers a grid with >= 2 blocks (v7x has 2 TensorCores), then the largest bf.
    """
    def tile_l_for(bf):
        cap = max(128, (block_bytes // (bf * c * 4)) // 128 * 128)
        return l if l <= cap else cap

    best_key, best = None, None
    for bf in range(1, min(bf_max, f) + 1):
        if f % bf != 0:
            continue
        tl = tile_l_for(bf)
        blocks = (f // bf) * pl.cdiv(l, tl)
        key = (blocks >= 2, bf)          # (enough parallelism, biggest batching)
        if best_key is None or key > best_key:
            best_key, best = key, (bf, tl)
    return best


# ---------------------------------------------------------------------------
# pallas_call wrapper
# ---------------------------------------------------------------------------
def _run_extractor_residual(x_gcl, w1_bd, b1_bd, w2_bd, b2_bd, tile_l):
    """x_gcl: (G, BC, L) f32 -> (G, BC, L) f32."""
    g, bc, l = x_gcl.shape
    grid = (g, pl.cdiv(l, tile_l))

    itemsize = x_gcl.dtype.itemsize
    flops = 4 * bc * bc * l * g                       # two (BC,BC)x(BC,L) matmuls / group
    bytes_accessed = 2 * g * bc * l * itemsize + 2 * (bc * bc * 2) + 2 * (bc * 4)

    return pl.pallas_call(
        _extract_residual_kernel,
        out_shape=jax.ShapeDtypeStruct((g, bc, l), x_gcl.dtype),
        grid=grid,
        in_specs=[
            pl.BlockSpec((1, bc, tile_l), lambda i, j: (i, 0, j)),   # x tile
            pl.BlockSpec((bc, bc), lambda i, j: (0, 0)),             # w1 (VMEM resident)
            pl.BlockSpec((bc, 1), lambda i, j: (0, 0)),              # b1 (resident)
            pl.BlockSpec((bc, bc), lambda i, j: (0, 0)),             # w2 (resident)
            pl.BlockSpec((bc, 1), lambda i, j: (0, 0)),              # b2 (resident)
        ],
        out_specs=pl.BlockSpec((1, bc, tile_l), lambda i, j: (i, 0, j)),
        compiler_params=pltpu.CompilerParams(
            dimension_semantics=("parallel", "parallel")),
        cost_estimate=pl.CostEstimate(flops=flops, transcendentals=0,
                                      bytes_accessed=bytes_accessed),
    )(x_gcl, w1_bd, b1_bd, w2_bd, b2_bd)


# ---------------------------------------------------------------------------
# Module forward
# ---------------------------------------------------------------------------
def second_order_recurrency_forward(curr_feats, flows, params, is_reversed=False,
                                    bf_max=8, block_bytes=_TARGET_BLOCK_BYTES):
    """Mirror of SecondOrderRecurrency.forward (pre_align=None, post_align=None).

    curr_feats: (n, t, c, h, w) float32   (PyTorch NCHW per frame)
    flows:      (n, t-1, 2, h, w) float32 (only consumed by the (None) pre_align path)
    params:     (w1 (c,c), b1 (c,1), w2 (c,c), b2 (c,1)) — conv weights as (out, in)
    returns:    (n, t, c, h, w) float32
    """
    n, t, c, h, w = curr_feats.shape
    del flows        # unused when pre_align is None
    del is_reversed  # reversed processing + final reverse is an exact identity here
    w1, b1, w2, b2 = params

    f, l = n * t, h * w
    bf, tile_l = _choose_tiling(f, c, l, bf_max, block_bytes)
    g, bc = f // bf, bf * c

    # Copy-free contiguous merges: (n,t,c,h,w) -> (n*t, c, h*w) -> (g, bf*c, h*w).
    x = curr_feats.reshape(g, bc, l)

    # Block-diagonal 1x1-conv weights (bf identical (c,c) blocks on the diagonal),
    # stored bf16 for single-pass MXU; biases tiled and kept f32.
    eye = jnp.eye(bf, dtype=w1.dtype)
    w1_bd = jnp.kron(eye, w1).astype(jnp.bfloat16)
    w2_bd = jnp.kron(eye, w2).astype(jnp.bfloat16)
    b1_bd = jnp.tile(b1, (bf, 1)).astype(jnp.float32)
    b2_bd = jnp.tile(b2, (bf, 1)).astype(jnp.float32)

    out = _run_extractor_residual(x, w1_bd, b1_bd, w2_bd, b2_bd, tile_l)
    return out.reshape(n, t, c, h, w)


# ---------------------------------------------------------------------------
# Pure-JAX reference (full f32 math)
# ---------------------------------------------------------------------------
def _reference(curr_feats, w1, b1, w2, b2):
    c = curr_feats.shape[2]
    b1v = b1.reshape(1, 1, c, 1, 1)
    b2v = b2.reshape(1, 1, c, 1, 1)
    hdd = jnp.einsum('oc,ntchw->ntohw', w1, curr_feats) + b1v
    hdd = jnp.where(hdd > 0, hdd, 0.1 * hdd)
    y = jnp.einsum('oc,ntchw->ntohw', w2, hdd) + b2v
    return y + curr_feats


if __name__ == "__main__":
    key = jax.random.PRNGKey(0)
    k_feat, k_flow, k_w1, k_b1, k_w2, k_b2, k_feat2 = jax.random.split(key, 7)

    n, t, c, h, w = 2, 4, 32, 16, 16
    curr_feats = jax.random.normal(k_feat, (n, t, c, h, w), dtype=jnp.float32)
    flows = jax.random.normal(k_flow, (n, t - 1, 2, h, w), dtype=jnp.float32)

    # Deterministic extractor parameters (two 1x1 convs over channels, (out,in)).
    w1 = 0.05 * jax.random.normal(k_w1, (c, c), dtype=jnp.float32)
    b1 = 0.01 * jax.random.normal(k_b1, (c, 1), dtype=jnp.float32)
    w2 = 0.05 * jax.random.normal(k_w2, (c, c), dtype=jnp.float32)
    b2 = 0.01 * jax.random.normal(k_b2, (c, 1), dtype=jnp.float32)
    params = (w1, b1, w2, b2)

    # Kernel runs the MXU on bf16 operands with f32 accumulation (residual path
    # stays f32), so compare against the f32 reference at a bf16-appropriate tol.
    TOL = dict(atol=1e-2, rtol=1e-2)

    out = jax.block_until_ready(
        second_order_recurrency_forward(curr_feats, flows, params,
                                        is_reversed=False))
    ref = _reference(curr_feats, w1, b1, w2, b2)
    assert out.shape == (n, t, c, h, w), out.shape
    assert jnp.allclose(out, ref, **TOL), "mismatch vs reference"

    # Reversed path (identical result for this configuration).
    out_rev = jax.block_until_ready(
        second_order_recurrency_forward(curr_feats, flows, params,
                                        is_reversed=True))
    assert jnp.allclose(out_rev, ref, **TOL), "reversed mismatch"

    # Exercise frame batching with bf=8 and a multi-tile pixel grid:
    # L = 512 with a 128 KiB block budget -> tile_l = 128 (4 lane tiles).
    h_b, w_b = 16, 32
    feats_b = jax.random.normal(k_feat2, (n, t, c, h_b, w_b), dtype=jnp.float32)
    flows_b = jnp.zeros((n, t - 1, 2, h_b, w_b), dtype=jnp.float32)
    out_b = jax.block_until_ready(
        second_order_recurrency_forward(feats_b, flows_b, params,
                                        block_bytes=128 * 1024))
    ref_b = _reference(feats_b, w1, b1, w2, b2)
    assert jnp.allclose(out_b, ref_b, **TOL), "tiled mismatch"

    print("KERNEL_OK")
</pallas_src>

<mosaic_0001>
module attributes {stable_mosaic.version = 11 : i64} {
  func.func @_extract_residual_kernel(%arg0: i32, %arg1: i32, %arg2: memref<1x128x256xf32, #tpu.memory_space<vmem>>, %arg3: memref<128x128xbf16, #tpu.memory_space<vmem>>, %arg4: memref<128x1xf32, #tpu.memory_space<vmem>>, %arg5: memref<128x128xbf16, #tpu.memory_space<vmem>>, %arg6: memref<128x1xf32, #tpu.memory_space<vmem>>, %arg7: memref<1x128x256xf32, #tpu.memory_space<vmem>>) attributes {dimension_semantics = [#tpu.dimension_semantics<parallel>, #tpu.dimension_semantics<parallel>], iteration_bounds = array<i64: 2, 1>, scalar_prefetch = 0 : i64, scratch_operands = 0 : i64, tpu.core_type = #tpu.core_type<tc>, window_params = [{transform_indices = @transform_0, window_bounds = array<i64: 1, 128, 256>}, {pipeline_mode = #tpu.pipeline_mode<synchronous>, transform_indices = @transform_1, window_bounds = array<i64: 128, 128>}, {pipeline_mode = #tpu.pipeline_mode<synchronous>, transform_indices = @transform_2, window_bounds = array<i64: 128, 1>}, {pipeline_mode = #tpu.pipeline_mode<synchronous>, transform_indices = @transform_3, window_bounds = array<i64: 128, 128>}, {pipeline_mode = #tpu.pipeline_mode<synchronous>, transform_indices = @transform_4, window_bounds = array<i64: 128, 1>}, {transform_indices = @transform_5, window_bounds = array<i64: 1, 128, 256>}]} {
    %c0 = arith.constant 0 : index
    %c0_0 = arith.constant 0 : index
    %c0_1 = arith.constant 0 : index
    %0 = vector.load %arg2[%c0, %c0_0, %c0_1] : memref<1x128x256xf32, #tpu.memory_space<vmem>>, vector<1x128x256xf32>
    %1 = vector.shape_cast %0 : vector<1x128x256xf32> to vector<128x256xf32>
    %c0_2 = arith.constant 0 : index
    %c0_3 = arith.constant 0 : index
    %2 = vector.load %arg3[%c0_2, %c0_3] : memref<128x128xbf16, #tpu.memory_space<vmem>>, vector<128x128xbf16>
    %3 = arith.truncf %1 : vector<128x256xf32> to vector<128x256xbf16>
    %cst = arith.constant dense<0.000000e+00> : vector<128x256xf32>
    %4 = tpu.matmul %2, %3, %cst {dimension_numbers = #tpu.dot_dimension_numbers<[1], [0], [0], [1], [0, 0, 1, 1], [], []>} : vector<128x128xbf16>, vector<128x256xbf16>, vector<128x256xf32> -> vector<128x256xf32>
    %c0_4 = arith.constant 0 : index
    %c0_5 = arith.constant 0 : index
    %5 = vector.load %arg4[%c0_4, %c0_5] : memref<128x1xf32, #tpu.memory_space<vmem>>, vector<128x1xf32>
    %6 = vector.broadcast %5 : vector<128x1xf32> to vector<128x256xf32>
    %7 = arith.addf %4, %6 : vector<128x256xf32>
    %cst_6 = arith.constant 1.000000e-01 : f32
    %8 = vector.broadcast %cst_6 : f32 to vector<128x256xf32>
    %9 = arith.mulf %8, %7 : vector<128x256xf32>
    %10 = arith.maximumf %7, %9 : vector<128x256xf32>
    %c0_7 = arith.constant 0 : index
    %c0_8 = arith.constant 0 : index
    %11 = vector.load %arg5[%c0_7, %c0_8] : memref<128x128xbf16, #tpu.memory_space<vmem>>, vector<128x128xbf16>
    %12 = arith.truncf %10 : vector<128x256xf32> to vector<128x256xbf16>
    %cst_9 = arith.constant dense<0.000000e+00> : vector<128x256xf32>
    %13 = tpu.matmul %11, %12, %cst_9 {dimension_numbers = #tpu.dot_dimension_numbers<[1], [0], [0], [1], [0, 0, 1, 1], [], []>} : vector<128x128xbf16>, vector<128x256xbf16>, vector<128x256xf32> -> vector<128x256xf32>
    %c0_10 = arith.constant 0 : index
    %c0_11 = arith.constant 0 : index
    %14 = vector.load %arg6[%c0_10, %c0_11] : memref<128x1xf32, #tpu.memory_space<vmem>>, vector<128x1xf32>
    %15 = vector.broadcast %14 : vector<128x1xf32> to vector<128x256xf32>
    %16 = arith.addf %13, %15 : vector<128x256xf32>
    %17 = arith.addf %16, %1 : vector<128x256xf32>
    %c0_12 = arith.constant 0 : index
    %c0_13 = arith.constant 0 : index
    %c0_14 = arith.constant 0 : index
    %18 = vector.load %arg7[%c0_12, %c0_13, %c0_14] : memref<1x128x256xf32, #tpu.memory_space<vmem>>, vector<1x128x256xf32>
    %19 = vector.shape_cast %18 : vector<1x128x256xf32> to vector<128x256xf32>
    %20 = vector.shape_cast %17 : vector<128x256xf32> to vector<1x128x256xf32>
    tpu.vector_store %arg7[%c0_12, %c0_13, %c0_14], %20 {strides = array<i32>} : memref<1x128x256xf32, #tpu.memory_space<vmem>>, vector<1x128x256xf32>,
    return
  }
  func.func @transform_0(%arg0: i32, %arg1: i32) -> (i32, i32, i32) {
    %c0_i32 = arith.constant 0 : i32
    %c0_i32_0 = arith.constant 0 : i32
    return %arg0, %c0_i32, %arg1 : i32, i32, i32
  }
  func.func @transform_1(%arg0: i32, %arg1: i32) -> (i32, i32) {
    %c0_i32 = arith.constant 0 : i32
    %c0_i32_0 = arith.constant 0 : i32
    %c0_i32_1 = arith.constant 0 : i32
    return %c0_i32, %c0_i32_0 : i32, i32
  }
  func.func @transform_2(%arg0: i32, %arg1: i32) -> (i32, i32) {
    %c0_i32 = arith.constant 0 : i32
    %c0_i32_0 = arith.constant 0 : i32
    %c0_i32_1 = arith.constant 0 : i32
    return %c0_i32, %c0_i32_0 : i32, i32
  }
  func.func @transform_3(%arg0: i32, %arg1: i32) -> (i32, i32) {
    %c0_i32 = arith.constant 0 : i32
    %c0_i32_0 = arith.constant 0 : i32
    %c0_i32_1 = arith.constant 0 : i32
    return %c0_i32, %c0_i32_0 : i32, i32
  }
  func.func @transform_4(%arg0: i32, %arg1: i32) -> (i32, i32) {
    %c0_i32 = arith.constant 0 : i32
    %c0_i32_0 = arith.constant 0 : i32
    %c0_i32_1 = arith.constant 0 : i32
    return %c0_i32, %c0_i32_0 : i32, i32
  }
  func.func @transform_5(%arg0: i32, %arg1: i32) -> (i32, i32, i32) {
    %c0_i32 = arith.constant 0 : i32
    %c0_i32_0 = arith.constant 0 : i32
    return %arg0, %c0_i32, %arg1 : i32, i32, i32
  }
}

</mosaic_0001>

<llo_original>
// kernel: tpu_custom_call.1
$region0: #{tpu_custom_call.1}
  #allocation0 [shape = 'u32[]', space=smem, size = 0x4, offset = 0x4, fixed_abs, tag = 'smem constant byte address 0x4 - core index']
  #allocation1 [shape = 'u32[144,128]{1,0:T(1,128)}', space=vmem, size = 0x12000, scoped, tag = 'internal scratch']
  %s0 = inlined_call_operand.hbm [shape: f32[2,128,256], index: 0, kind: input, shape index: {}]
  %s1 = inlined_call_operand.vmem [shape: bf16[128,128], index: 1, kind: input, shape index: {}]
  %s2 = inlined_call_operand.vmem [shape: f32[128,1], index: 2, kind: input, shape index: {}]
  %s3 = inlined_call_operand.vmem [shape: bf16[128,128], index: 3, kind: input, shape index: {}]
  %s4 = inlined_call_operand.vmem [shape: f32[128,1], index: 4, kind: input, shape index: {}]
  %s5 = inlined_call_operand.hbm [shape: f32[2,128,256], index: 5, kind: output, shape index: {}]
  %s6 = sld [smem:[#allocation0]]
  $region57: #{tpu_custom_call.1} parent=0
    _
  %s8 = ssub.s32 1, %s6
  %s9 = scalar_select 0, %s8, %s6
  $region1: #{tpu_custom_call.1} parent=0
    #allocation2 [shape = 'u8[262144]{0}', space=vmem, size = 0x40000, scoped, tag = 'input window, operand 0']
    #allocation3 [shape = 's32[2]{0}', space=sflag, size = 0x8, scoped, tag = 'scoped memory for tpu_custom_call.1']
    #allocation4 [shape = 's32[2]{0}', space=sflag, size = 0x8, scoped, tag = 'scoped memory for tpu_custom_call.1']
    #allocation5 [shape = 'u8[262144]{0}', space=vmem, size = 0x40000, scoped, tag = 'output window, operand 0']
    %10 = vsyncpa [#allocation3], 0
    %s11 = scalar_lea.sflag [#allocation3], 1
    %12 = vsyncpa %s11, 0
    %13 = vsyncpa [#allocation4], 0
    %s14 = scalar_lea.sflag [#allocation4], 1
    %15 = vsyncpa %s14, 0
    loop: start=0, step=1, limit=4
    $region2: #{tpu_custom_call.1} parent=1 // loop_pre_header
      _
    $region3: #{tpu_custom_call.1} parent=1 // loop_header
      %s17 = sphi 0, %s21
      %p18 = scmp.ge.s32.totalorder %s17, 4
      %s24 = sphi 0, %s36
      %s25 = sphi 0, %s32
      %s26 = sphi 0, %s24
      %s27 = sphi 0, %s25
      %s28 = sphi 0, %s26
      %s29 = sphi 0, %s27
      %s41 = sphi 0, %s43
      %s44 = sphi 0, %s41
      %s45 = sphi 0, %s44
      %s61 = sphi 0, %s45
      %s65 = sphi 0, %s65
      %s67 = sphi 0, %s65
      %s68 = sphi 0, %s67
      %s82 = sphi 0, %s68
      %s86 = sphi 0, %s86
      %s88 = sphi 0, %s86
      %s89 = sphi 0, %s88
      %s103 = sphi 0, %s89
      %s107 = sphi 0, %s107
      %s109 = sphi 0, %s107
      %s110 = sphi 0, %s109
      %s124 = sphi 0, %s110
      %s128 = sphi 0, %s128
      %s130 = sphi 0, %s128
      %s131 = sphi 0, %s130
      %s145 = sphi 0, %s131
      %s153 = sphi 0, %s155
      %s156 = sphi 0, %s153
      %s157 = sphi 0, %s156
      %s173 = sphi 0, %s157
    $region4: #{tpu_custom_call.1} parent=1 // loop_header_branch
      %20 = sbr.rel (%p18) target = $region8
    $region5: #{tpu_custom_call.1} parent=1 // loop_body
      %s22 = ssub.s32 %s17, 1
      %s23 = ssub.s32 %s17, 2
      %s30 = sadd.s32 1, %s25
      %p31 = scmp.ge.s32.totalorder %s30, 1
      %s32 = scalar_select %p31, 0, %s30
      %s33 = sadd.s32 1, %s24
      %s34 = scalar_select %p31, %s33, %s24
      %p35 = scmp.ge.s32.totalorder %s34, 2
      %s36 = scalar_select %p35, 0, %s34
      %s37 = ssub.s32 %s24, %s36
      %s38 = ssub.s32 %s25, %s32
      %s39 = sor.u32 %s37, %s38
      %p40 = scmp.eq.s32.totalorder %s39, 0
      %s42 = sadd.s32 %s41, 1
      %s43 = scalar_select %p40, %s41, %s42
      %p46 = pneg %p40
      %p47 = scmp.eq.s32.totalorder %s17, 1
      %p48 = por %p46, %p47
      %p49 = scmp.ne.s32.totalorder %s41, %s44
      %p50 = scmp.eq.s32.totalorder %s17, 0
      %p51 = por %p49, %p50
      %p52 = scmp.ne.s32.totalorder %s41, %s44
      %p53 = scmp.eq.s32.totalorder %s22, 1
      %p54 = por %p52, %p53
      %p55 = scmp.ne.s32.totalorder %s44, %s45
      %p56 = scmp.eq.s32.totalorder %s22, 0
      %p57 = por %p55, %p56
      %p58 = scmp.ne.s32.totalorder %s44, %s45
      %p59 = scmp.eq.s32.totalorder %s23, 1
      %p60 = por %p58, %p59
      %p62 = scmp.ne.s32.totalorder %s45, %s61
      %p63 = scmp.eq.s32.totalorder %s23, 0
      %p64 = por %p62, %p63
      %s66 = sadd.s32 %s65, 1
      %p69 = scmp.eq.s32.totalorder %s17, 1
      %p70 = scmp.ne.s32.totalorder %s65, %s67
      %p71 = scmp.eq.s32.totalorder %s17, 0
      %p72 = por %p70, %p71
      %p73 = scmp.ne.s32.totalorder %s65, %s67
      %p74 = scmp.eq.s32.totalorder %s22, 1
      %p75 = por %p73, %p74
      %p76 = scmp.ne.s32.totalorder %s67, %s68
      %p77 = scmp.eq.s32.totalorder %s22, 0
      %p78 = por %p76, %p77
      %p79 = scmp.ne.s32.totalorder %s67, %s68
      %p80 = scmp.eq.s32.totalorder %s23, 1
      %p81 = por %p79, %p80
      %p83 = scmp.ne.s32.totalorder %s68, %s82
      %p84 = scmp.eq.s32.totalorder %s23, 0
      %p85 = por %p83, %p84
      %s87 = sadd.s32 %s86, 1
      %p90 = scmp.eq.s32.totalorder %s17, 1
      %p91 = scmp.ne.s32.totalorder %s86, %s88
      %p92 = scmp.eq.s32.totalorder %s17, 0
      %p93 = por %p91, %p92
      %p94 = scmp.ne.s32.totalorder %s86, %s88
      %p95 = scmp.eq.s32.totalorder %s22, 1
      %p96 = por %p94, %p95
      %p97 = scmp.ne.s32.totalorder %s88, %s89
      %p98 = scmp.eq.s32.totalorder %s22, 0
      %p99 = por %p97, %p98
      %p100 = scmp.ne.s32.totalorder %s88, %s89
      %p101 = scmp.eq.s32.totalorder %s23, 1
      %p102 = por %p100, %p101
      %p104 = scmp.ne.s32.totalorder %s89, %s103
      %p105 = scmp.eq.s32.totalorder %s23, 0
      %p106 = por %p104, %p105
      %s108 = sadd.s32 %s107, 1
      %p111 = scmp.eq.s32.totalorder %s17, 1
      %p112 = scmp.ne.s32.totalorder %s107, %s109
      %p113 = scmp.eq.s32.totalorder %s17, 0
      %p114 = por %p112, %p113
      %p115 = scmp.ne.s32.totalorder %s107, %s109
      %p116 = scmp.eq.s32.totalorder %s22, 1
      %p117 = por %p115, %p116
      %p118 = scmp.ne.s32.totalorder %s109, %s110
      %p119 = scmp.eq.s32.totalorder %s22, 0
      %p120 = por %p118, %p119
      %p121 = scmp.ne.s32.totalorder %s109, %s110
      %p122 = scmp.eq.s32.totalorder %s23, 1
      %p123 = por %p121, %p122
      %p125 = scmp.ne.s32.totalorder %s110, %s124
      %p126 = scmp.eq.s32.totalorder %s23, 0
      %p127 = por %p125, %p126
      %s129 = sadd.s32 %s128, 1
      %p132 = scmp.eq.s32.totalorder %s17, 1
      %p133 = scmp.ne.s32.totalorder %s128, %s130
      %p134 = scmp.eq.s32.totalorder %s17, 0
      %p135 = por %p133, %p134
      %p136 = scmp.ne.s32.totalorder %s128, %s130
      %p137 = scmp.eq.s32.totalorder %s22, 1
      %p138 = por %p136, %p137
      %p139 = scmp.ne.s32.totalorder %s130, %s131
      %p140 = scmp.eq.s32.totalorder %s22, 0
      %p141 = por %p139, %p140
      %p142 = scmp.ne.s32.totalorder %s130, %s131
      %p143 = scmp.eq.s32.totalorder %s23, 1
      %p144 = por %p142, %p143
      %p146 = scmp.ne.s32.totalorder %s131, %s145
      %p147 = scmp.eq.s32.totalorder %s23, 0
      %p148 = por %p146, %p147
      %s149 = ssub.s32 %s24, %s36
      %s150 = ssub.s32 %s25, %s32
      %s151 = sor.u32 %s149, %s150
      %p152 = scmp.eq.s32.totalorder %s151, 0
      %s154 = sadd.s32 %s153, 1
      %s155 = scalar_select %p152, %s153, %s154
      %p158 = pneg %p152
      %p159 = scmp.eq.s32.totalorder %s17, 1
      %p160 = por %p158, %p159
      %p161 = scmp.ne.s32.totalorder %s153, %s156
      %p162 = scmp.eq.s32.totalorder %s17, 0
      %p163 = por %p161, %p162
      %p164 = scmp.ne.s32.totalorder %s153, %s156
      %p165 = scmp.eq.s32.totalorder %s22, 1
      %p166 = por %p164, %p165
      %p167 = scmp.ne.s32.totalorder %s156, %s157
      %p168 = scmp.eq.s32.totalorder %s22, 0
      %p169 = por %p167, %p168
      %p170 = scmp.ne.s32.totalorder %s156, %s157
      %p171 = scmp.eq.s32.totalorder %s23, 1
      %p172 = por %p170, %p171
      %p174 = scmp.ne.s32.totalorder %s157, %s173
      %p175 = scmp.eq.s32.totalorder %s23, 0
      %p176 = por %p174, %p175
      %p177 = scmp.le.s32.totalorder 1, %s17
      %p178 = scmp.lt.s32.totalorder %s17, 3
      %p179 = pnand %p177, %p178
      %p180 = pneg %p179
      // Predicated region
      $region9: #{tpu_custom_call.1} parent=5 // pred_check
        _
      $region10: #{tpu_custom_call.1} parent=5 // pred_check_branch
        %182 = sbr.rel (%p179) target = $region12
      $region11: #{tpu_custom_call.1} parent=5 // pred_region
        %s183 = ssub.s32 %s17, 1
        // Predicated region
        $region13: #{tpu_custom_call.1} parent=11 // pred_check
          %p184 = pneg %p78
        $region14: #{tpu_custom_call.1} parent=11 // pred_check_branch
          %186 = sbr.rel (%p184) target = $region16
        $region15: #{tpu_custom_call.1} parent=11 // pred_region
          _
        $region16: #{tpu_custom_call.1} parent=11 // pred_fallthru
          _
        // Predicated region
        $region17: #{tpu_custom_call.1} parent=11 // pred_check
          %p187 = pneg %p99
        $region18: #{tpu_custom_call.1} parent=11 // pred_check_branch
          %189 = sbr.rel (%p187) target = $region20
        $region19: #{tpu_custom_call.1} parent=11 // pred_region
          _
        $region20: #{tpu_custom_call.1} parent=11 // pred_fallthru
          _
        // Predicated region
        $region21: #{tpu_custom_call.1} parent=11 // pred_check
          %p190 = pneg %p120
        $region22: #{tpu_custom_call.1} parent=11 // pred_check_branch
          %192 = sbr.rel (%p190) target = $region24
        $region23: #{tpu_custom_call.1} parent=11 // pred_region
          _
        $region24: #{tpu_custom_call.1} parent=11 // pred_fallthru
          _
        // Predicated region
        $region25: #{tpu_custom_call.1} parent=11 // pred_check
          %p193 = pneg %p141
        $region26: #{tpu_custom_call.1} parent=11 // pred_check_branch
          %195 = sbr.rel (%p193) target = $region28
        $region27: #{tpu_custom_call.1} parent=11 // pred_region
          _
        $region28: #{tpu_custom_call.1} parent=11 // pred_fallthru
          _
      $region12: #{tpu_custom_call.1} parent=5 // pred_fallthru
        _
      %p196 = scmp.lt.s32.totalorder %s17, 2
      // Predicated region
      $region29: #{tpu_custom_call.1} parent=5 // pred_check
        %p197 = pneg %p196
      $region30: #{tpu_custom_call.1} parent=5 // pred_check_branch
        %199 = sbr.rel (%p197) target = $region32
      $region31: #{tpu_custom_call.1} parent=5 // pred_region
        // Predicated region
        $region33: #{tpu_custom_call.1} parent=31 // pred_check
          %p200 = pneg %p51
        $region34: #{tpu_custom_call.1} parent=31 // pred_check_branch
          %202 = sbr.rel (%p200) target = $region36
        $region35: #{tpu_custom_call.1} parent=31 // pred_region
          %s203 = sand.u32 %s41, 1
          %s204 = scalar_lea.sflag [#allocation3], %s203
          %s205 = sand.u32 %s41, 1
          %s206 = smul.addr %s205, 256
          %s207 = scalar_lea.vmem [#allocation2], %s206
          %s208 = smul.u32 2, %s25
          %s210 = ssub.s32 4096, 4096
          %211 = vsyncadd %s204, %s210
          %s212 = smul.addr %s24, 32
          %s213 = sadd.s32 %s208, %s212
          %s214 = smul.addr %s213, 128
          %s215 = scalar_lea.hbm %s0, %s214
          %s216 = sshll.u32 %s207, 4
          %s217 = int_to_ptr.vmem [resolvable:$true] %s216
          %222 = dma.hbm_to_vmem [thread:$0]  %s215, 4096, %s217, %s204, 256, 256, 16
        $region36: #{tpu_custom_call.1} parent=31 // pred_fallthru
          _
      $region32: #{tpu_custom_call.1} parent=5 // pred_fallthru
        _
      %p223 = scmp.le.s32.totalorder 1, %s17
      %p224 = scmp.lt.s32.totalorder %s17, 3
      %p225 = pnand %p223, %p224
      %p226 = pneg %p225
      // Predicated region
      $region37: #{tpu_custom_call.1} parent=5 // pred_check
        _
      $region38: #{tpu_custom_call.1} parent=5 // pred_check_branch
        %228 = sbr.rel (%p225) target = $region40
      $region39: #{tpu_custom_call.1} parent=5 // pred_region
        %s229 = ssub.s32 %s17, 1
        %s230 = sand.u32 %s44, 1
        %s231 = scalar_lea.sflag [#allocation3], %s230
        %s232 = sand.u32 %s44, 1
        %s233 = smul.addr %s232, 256
        %s234 = scalar_lea.vmem [#allocation2], %s233
        // Predicated region
        $region41: #{tpu_custom_call.1} parent=39 // pred_check
          %p235 = pneg %p57
        $region42: #{tpu_custom_call.1} parent=39 // pred_check_branch
          %237 = sbr.rel (%p235) target = $region44
        $region43: #{tpu_custom_call.1} parent=39 // pred_region
          %238 = dma.done %s231, 4096
        $region44: #{tpu_custom_call.1} parent=39 // pred_fallthru
          _
        %s239 = sand.u32 %s44, 1
        %s240 = scalar_lea.sflag [#allocation3], %s239
        %s241 = sand.u32 %s44, 1
        %s242 = smul.addr %s241, 256
        %s243 = scalar_lea.vmem [#allocation2], %s242
        %p244 = pneg %p57
        %p245 = pneg %p54
        %p246 = pneg %p78
        %p247 = pneg %p75
        %p248 = pneg %p99
        %p249 = pneg %p96
        %p250 = pneg %p120
        %p251 = pneg %p117
        %p252 = pneg %p141
        %p253 = pneg %p138
        %p254 = pneg %p169
        %p255 = pneg %p166
        %s256 = sand.u32 %s156, 1
        %s257 = scalar_lea.sflag [#allocation4], %s256
        %s258 = sand.u32 %s156, 1
        %s259 = smul.addr %s258, 256
        %s260 = scalar_lea.vmem [#allocation5], %s259
        %s261 = smul.u32 2, %s27
        %s262 = smul.u32 2, %s27
        %v264 = vld [vmem:[%s234] sm:$0xff]
        %v265 = vld [vmem:[%s234 + $0x8] sm:$0xff]
        %v266 = vld [vmem:[%s234 + $0x10] sm:$0xff]
        %v267 = vld [vmem:[%s234 + $0x18] sm:$0xff]
        %v268 = vld [vmem:[%s234 + $0x20] sm:$0xff]
        %v269 = vld [vmem:[%s234 + $0x28] sm:$0xff]
        %v270 = vld [vmem:[%s234 + $0x30] sm:$0xff]
        %v271 = vld [vmem:[%s234 + $0x38] sm:$0xff]
        %v272 = vld [vmem:[%s234 + $0x40] sm:$0xff]
        %v273 = vld [vmem:[%s234 + $0x48] sm:$0xff]
        %v274 = vld [vmem:[%s234 + $0x50] sm:$0xff]
        %v275 = vld [vmem:[%s234 + $0x58] sm:$0xff]
        %v276 = vld [vmem:[%s234 + $0x60] sm:$0xff]
        %v277 = vld [vmem:[%s234 + $0x68] sm:$0xff]
        %v278 = vld [vmem:[%s234 + $0x70] sm:$0xff]
        %v279 = vld [vmem:[%s234 + $0x78] sm:$0xff]
        %v280 = vld [vmem:[%s234 + $0x80] sm:$0xff]
        %v281 = vld [vmem:[%s234 + $0x88] sm:$0xff]
        %v282 = vld [vmem:[%s234 + $0x90] sm:$0xff]
        %v283 = vld [vmem:[%s234 + $0x98] sm:$0xff]
        %v284 = vld [vmem:[%s234 + $0xa0] sm:$0xff]
        %v285 = vld [vmem:[%s234 + $0xa8] sm:$0xff]
        %v286 = vld [vmem:[%s234 + $0xb0] sm:$0xff]
        %v287 = vld [vmem:[%s234 + $0xb8] sm:$0xff]
        %v288 = vld [vmem:[%s234 + $0xc0] sm:$0xff]
        %v289 = vld [vmem:[%s234 + $0xc8] sm:$0xff]
        %v290 = vld [vmem:[%s234 + $0xd0] sm:$0xff]
        %v291 = vld [vmem:[%s234 + $0xd8] sm:$0xff]
        %v292 = vld [vmem:[%s234 + $0xe0] sm:$0xff]
        %v293 = vld [vmem:[%s234 + $0xe8] sm:$0xff]
        %v294 = vld [vmem:[%s234 + $0xf0] sm:$0xff]
        %v295 = vld [vmem:[%s234 + $0xf8] sm:$0xff]
        %v296 = vld [vmem:[%s1] sm:$0xf]
        %v297 = vld [vmem:[%s1 + $0x4] sm:$0xf]
        %v298 = vld [vmem:[%s1 + $0x8] sm:$0xf]
        %v299 = vld [vmem:[%s1 + $0xc] sm:$0xf]
        %v300 = vld [vmem:[%s1 + $0x10] sm:$0xf]
        %v301 = vld [vmem:[%s1 + $0x14] sm:$0xf]
        %v302 = vld [vmem:[%s1 + $0x18] sm:$0xf]
        %v303 = vld [vmem:[%s1 + $0x1c] sm:$0xf]
        %v304 = vld [vmem:[%s1 + $0x20] sm:$0xf]
        %v305 = vld [vmem:[%s1 + $0x24] sm:$0xf]
        %v306 = vld [vmem:[%s1 + $0x28] sm:$0xf]
        %v307 = vld [vmem:[%s1 + $0x2c] sm:$0xf]
        %v308 = vld [vmem:[%s1 + $0x30] sm:$0xf]
        %v309 = vld [vmem:[%s1 + $0x34] sm:$0xf]
        %v310 = vld [vmem:[%s1 + $0x38] sm:$0xf]
        %v311 = vld [vmem:[%s1 + $0x3c] sm:$0xf]
        %v312 = vpack.c.bf16 %v266, %v264
        %v313 = vpack.c.bf16 %v267, %v265
        %v314 = vpack.c.bf16 %v270, %v268
        %v315 = vpack.c.bf16 %v271, %v269
        %v316 = vpack.c.bf16 %v274, %v272
        %v317 = vpack.c.bf16 %v275, %v273
        %v318 = vpack.c.bf16 %v278, %v276
        %v319 = vpack.c.bf16 %v279, %v277
        %v320 = vpack.c.bf16 %v282, %v280
        %v321 = vpack.c.bf16 %v283, %v281
        %v322 = vpack.c.bf16 %v286, %v284
        %v323 = vpack.c.bf16 %v287, %v285
        %v324 = vpack.c.bf16 %v290, %v288
        %v325 = vpack.c.bf16 %v291, %v289
        %v326 = vpack.c.bf16 %v294, %v292
        %v327 = vpack.c.bf16 %v295, %v293
        %v328 = vld [vmem:[%s2] sm:$0xff]
        %v329 = vld [vmem:[%s2 + $0x8] sm:$0xff]
        %v330 = vld [vmem:[%s2 + $0x10] sm:$0xff]
        %v331 = vld [vmem:[%s2 + $0x18] sm:$0xff]
        %v332 = vld [vmem:[%s2 + $0x20] sm:$0xff]
        %v333 = vld [vmem:[%s2 + $0x28] sm:$0xff]
        %v334 = vld [vmem:[%s2 + $0x30] sm:$0xff]
        %v335 = vld [vmem:[%s2 + $0x38] sm:$0xff]
        %v336 = vld [vmem:[%s2 + $0x40] sm:$0xff]
        %v337 = vld [vmem:[%s2 + $0x48] sm:$0xff]
        %v338 = vld [vmem:[%s2 + $0x50] sm:$0xff]
        %v339 = vld [vmem:[%s2 + $0x58] sm:$0xff]
        %v340 = vld [vmem:[%s2 + $0x60] sm:$0xff]
        %v341 = vld [vmem:[%s2 + $0x68] sm:$0xff]
        %v342 = vld [vmem:[%s2 + $0x70] sm:$0xff]
        %v343 = vld [vmem:[%s2 + $0x78] sm:$0xff]
        %345 = vset.pattern.permute.xlu0 0
        %346 = vperm.xlu0 %345, %v328
        %v347 = vpop.permute.xlu0 %346
        %350 = vset.pattern.permute.xlu0 0
        %351 = vperm.xlu0 %350, %v329
        %v352 = vpop.permute.xlu0 %351
        %355 = vset.pattern.permute.xlu0 0
        %356 = vperm.xlu0 %355, %v330
        %v357 = vpop.permute.xlu0 %356
        %360 = vset.pattern.permute.xlu0 0
        %361 = vperm.xlu0 %360, %v331
        %v362 = vpop.permute.xlu0 %361
        %365 = vset.pattern.permute.xlu0 0
        %366 = vperm.xlu0 %365, %v332
        %v367 = vpop.permute.xlu0 %366
        %370 = vset.pattern.permute.xlu0 0
        %371 = vperm.xlu0 %370, %v333
        %v372 = vpop.permute.xlu0 %371
        %375 = vset.pattern.permute.xlu0 0
        %376 = vperm.xlu0 %375, %v334
        %v377 = vpop.permute.xlu0 %376
        %380 = vset.pattern.permute.xlu0 0
        %381 = vperm.xlu0 %380, %v335
        %v382 = vpop.permute.xlu0 %381
        %385 = vset.pattern.permute.xlu0 0
        %386 = vperm.xlu0 %385, %v336
        %v387 = vpop.permute.xlu0 %386
        %390 = vset.pattern.permute.xlu0 0
        %391 = vperm.xlu0 %390, %v337
        %v392 = vpop.permute.xlu0 %391
        %395 = vset.pattern.permute.xlu0 0
        %396 = vperm.xlu0 %395, %v338
        %v397 = vpop.permute.xlu0 %396
        %400 = vset.pattern.permute.xlu0 0
        %401 = vperm.xlu0 %400, %v339
        %v402 = vpop.permute.xlu0 %401
        %405 = vset.pattern.permute.xlu0 0
        %406 = vperm.xlu0 %405, %v340
        %v407 = vpop.permute.xlu0 %406
        %410 = vset.pattern.permute.xlu0 0
        %411 = vperm.xlu0 %410, %v341
        %v412 = vpop.permute.xlu0 %411
        %415 = vset.pattern.permute.xlu0 0
        %416 = vperm.xlu0 %415, %v342
        %v417 = vpop.permute.xlu0 %416
        %420 = vset.pattern.permute.xlu0 0
        %421 = vperm.xlu0 %420, %v343
        %v422 = vpop.permute.xlu0 %421
        %v440 = vunpack.c.l.b16 %v296
        %v441 = vunpack.c.l.b16 %v297
        %v442 = vunpack.c.l.b16 %v298
        %v443 = vunpack.c.l.b16 %v299
        %v444 = vunpack.c.l.b16 %v300
        %v445 = vunpack.c.l.b16 %v301
        %v446 = vunpack.c.l.b16 %v302
        %v447 = vunpack.c.l.b16 %v303
        %v448 = vunpack.c.l.b16 %v304
        %v449 = vunpack.c.l.b16 %v305
        %v450 = vunpack.c.l.b16 %v306
        %v451 = vunpack.c.l.b16 %v307
        %v452 = vunpack.c.l.b16 %v308
        %v453 = vunpack.c.l.b16 %v309
        %v454 = vunpack.c.l.b16 %v310
        %v455 = vunpack.c.l.b16 %v311
        %v456 = vpack.c.b16 %v441, %v440
        %v457 = vpack.c.b16 %v443, %v442
        %v458 = vpack.c.b16 %v445, %v444
        %v459 = vpack.c.b16 %v447, %v446
        %v460 = vpack.c.b16 %v449, %v448
        %v461 = vpack.c.b16 %v451, %v450
        %v462 = vpack.c.b16 %v453, %v452
        %v463 = vpack.c.b16 %v455, %v454
        %472 = vmatprep.subr.bf16.mxu0 %v313
        %473 = vmatpush1.bf16.msra.mxu0 %v312
        %474 = vmatprep.subr.bf16.mxu0 %v315
        %475 = vmatpush1.bf16.msra.mxu0 %v314
        %476 = vmatprep.subr.bf16.mxu0 %v317
        %477 = vmatpush1.bf16.msra.mxu0 %v316
        %478 = vmatprep.subr.bf16.mxu0 %v319
        %479 = vmatpush1.bf16.msra.mxu0 %v318
        %480 = vmatprep.subr.bf16.mxu0 %v321
        %481 = vmatpush1.bf16.msra.mxu0 %v320
        %482 = vmatprep.subr.bf16.mxu0 %v323
        %483 = vmatpush1.bf16.msra.mxu0 %v322
        %484 = vmatprep.subr.bf16.mxu0 %v325
        %485 = vmatpush1.bf16.msra.mxu0 %v324
        %486 = vmatprep.subr.bf16.mxu0 %v327
        %487 = vmatpush1.bf16.msra.mxu0 %v326
        %488 = vmatprep.subr.bf16.mxu0 0
        %489 = vmatpush1.bf16.msra.mxu0 0
        %490 = vmatprep.subr.bf16.mxu0 0
        %491 = vmatpush1.bf16.msra.mxu0 0
        %492 = vmatprep.subr.bf16.mxu0 0
        %493 = vmatpush1.bf16.msra.mxu0 0
        %494 = vmatprep.subr.bf16.mxu0 0
        %495 = vmatpush1.bf16.msra.mxu0 0
        %496 = vmatprep.subr.bf16.mxu0 0
        %497 = vmatpush1.bf16.msra.mxu0 0
        %498 = vmatprep.subr.bf16.mxu0 0
        %499 = vmatpush1.bf16.msra.mxu0 0
        %500 = vmatprep.subr.bf16.mxu0 0
        %501 = vmatpush1.bf16.msra.mxu0 0
        %502 = vmatprep.subr.bf16.mxu0 0
        %503 = vmatpush1.bf16.msra.mxu0 0
        %504 = vmatprep.mubr.bf16.mxu0 0
        %505 = vmatmul.mubr.bf16.gmra.mrb[0].mxu0 %v456
        %v506 = vpop.f32.mrb[0].mxu0
        %v507 = vadd.f32 %v347, %v506
        %v508 = vpop.f32.mrb[0].mxu0
        %v509 = vadd.f32 %v347, %v508
        %v510 = vpop.f32.mrb[0].mxu0
        %v511 = vadd.f32 %v352, %v510
        %v512 = vpop.f32.mrb[0].mxu0
        %v513 = vadd.f32 %v352, %v512
        %514 = vmatprep.mubr.bf16.mxu0 0
        %515 = vmatmul.mubr.bf16.gmra.mrb[0].mxu0 %v457
        %v516 = vpop.f32.mrb[0].mxu0
        %v517 = vadd.f32 %v357, %v516
        %v518 = vpop.f32.mrb[0].mxu0
        %v519 = vadd.f32 %v357, %v518
        %v520 = vpop.f32.mrb[0].mxu0
        %v521 = vadd.f32 %v362, %v520
        %v522 = vpop.f32.mrb[0].mxu0
        %v523 = vadd.f32 %v362, %v522
        %524 = vmatprep.mubr.bf16.mxu0 0
        %525 = vmatmul.mubr.bf16.gmra.mrb[0].mxu0 %v458
        %v526 = vpop.f32.mrb[0].mxu0
        %v527 = vadd.f32 %v367, %v526
        %v528 = vpop.f32.mrb[0].mxu0
        %v529 = vadd.f32 %v367, %v528
        %v530 = vpop.f32.mrb[0].mxu0
        %v531 = vadd.f32 %v372, %v530
        %v532 = vpop.f32.mrb[0].mxu0
        %v533 = vadd.f32 %v372, %v532
        %534 = vmatprep.mubr.bf16.mxu0 0
        %535 = vmatmul.mubr.bf16.gmra.mrb[0].mxu0 %v459
        %v536 = vpop.f32.mrb[0].mxu0
        %v537 = vadd.f32 %v377, %v536
        %v538 = vpop.f32.mrb[0].mxu0
        %v539 = vadd.f32 %v377, %v538
        %v540 = vpop.f32.mrb[0].mxu0
        %v541 = vadd.f32 %v382, %v540
        %v542 = vpop.f32.mrb[0].mxu0
        %v543 = vadd.f32 %v382, %v542
        %544 = vmatprep.mubr.bf16.mxu0 0
        %545 = vmatmul.mubr.bf16.gmra.mrb[0].mxu0 %v460
        %v546 = vpop.f32.mrb[0].mxu0
        %v547 = vadd.f32 %v387, %v546
        %v548 = vpop.f32.mrb[0].mxu0
        %v549 = vadd.f32 %v387, %v548
        %v550 = vpop.f32.mrb[0].mxu0
        %v551 = vadd.f32 %v392, %v550
        %v552 = vpop.f32.mrb[0].mxu0
        %v553 = vadd.f32 %v392, %v552
        %554 = vmatprep.mubr.bf16.mxu0 0
        %555 = vmatmul.mubr.bf16.gmra.mrb[0].mxu0 %v461
        %v556 = vpop.f32.mrb[0].mxu0
        %v557 = vadd.f32 %v397, %v556
        %v558 = vpop.f32.mrb[0].mxu0
        %v559 = vadd.f32 %v397, %v558
        %v560 = vpop.f32.mrb[0].mxu0
        %v561 = vadd.f32 %v402, %v560
        %v562 = vpop.f32.mrb[0].mxu0
        %v563 = vadd.f32 %v402, %v562
        %564 = vmatprep.mubr.bf16.mxu0 0
        %565 = vmatmul.mubr.bf16.gmra.mrb[0].mxu0 %v462
        %v566 = vpop.f32.mrb[0].mxu0
        %v567 = vadd.f32 %v407, %v566
        %v568 = vpop.f32.mrb[0].mxu0
        %v569 = vadd.f32 %v407, %v568
        %v570 = vpop.f32.mrb[0].mxu0
        %v571 = vadd.f32 %v412, %v570
        %v572 = vpop.f32.mrb[0].mxu0
        %v573 = vadd.f32 %v412, %v572
        %574 = vmatprep.mubr.bf16.mxu0 0
        %575 = vmatmul.mubr.bf16.gmra.mrb[0].mxu0 %v463
        %v576 = vpop.f32.mrb[0].mxu0
        %v577 = vadd.f32 %v417, %v576
        %v578 = vpop.f32.mrb[0].mxu0
        %v579 = vadd.f32 %v417, %v578
        %v580 = vpop.f32.mrb[0].mxu0
        %v581 = vadd.f32 %v422, %v580
        %v582 = vpop.f32.mrb[0].mxu0
        %v583 = vadd.f32 %v422, %v582
        %584 = vdwg.mxu0
        %v585 = vmul.f32 %v507, 0.1
        %v586 = vmul.f32 %v509, 0.1
        %v587 = vmul.f32 %v511, 0.1
        %v588 = vmul.f32 %v513, 0.1
        %v589 = vmul.f32 %v517, 0.1
        %v590 = vmul.f32 %v519, 0.1
        %v591 = vmul.f32 %v521, 0.1
        %v592 = vmul.f32 %v523, 0.1
        %v593 = vmul.f32 %v527, 0.1
        %v594 = vmul.f32 %v529, 0.1
        %v595 = vmul.f32 %v531, 0.1
        %v596 = vmul.f32 %v533, 0.1
        %v597 = vmul.f32 %v537, 0.1
        %v598 = vmul.f32 %v539, 0.1
        %v599 = vmul.f32 %v541, 0.1
        %v600 = vmul.f32 %v543, 0.1
        %v601 = vmul.f32 %v547, 0.1
        %v602 = vmul.f32 %v549, 0.1
        %v603 = vmul.f32 %v551, 0.1
        %v604 = vmul.f32 %v553, 0.1
        %v605 = vmul.f32 %v557, 0.1
        %v606 = vmul.f32 %v559, 0.1
        %v607 = vmul.f32 %v561, 0.1
        %v608 = vmul.f32 %v563, 0.1
        %v609 = vmul.f32 %v567, 0.1
        %v610 = vmul.f32 %v569, 0.1
        %v611 = vmul.f32 %v571, 0.1
        %v612 = vmul.f32 %v573, 0.1
        %v613 = vmul.f32 %v577, 0.1
        %v614 = vmul.f32 %v579, 0.1
        %v615 = vmul.f32 %v581, 0.1
        %v616 = vmul.f32 %v583, 0.1
        %v617 = vmax.f32 %v507, %v585
        %v618 = vmax.f32 %v509, %v586
        %v619 = vmax.f32 %v511, %v587
        %v620 = vmax.f32 %v513, %v588
        %v621 = vmax.f32 %v517, %v589
        %v622 = vmax.f32 %v519, %v590
        %v623 = vmax.f32 %v521, %v591
        %v624 = vmax.f32 %v523, %v592
        %v625 = vmax.f32 %v527, %v593
        %v626 = vmax.f32 %v529, %v594
        %v627 = vmax.f32 %v531, %v595
        %v628 = vmax.f32 %v533, %v596
        %v629 = vmax.f32 %v537, %v597
        %v630 = vmax.f32 %v539, %v598
        %v631 = vmax.f32 %v541, %v599
        %v632 = vmax.f32 %v543, %v600
        %v633 = vmax.f32 %v547, %v601
        %v634 = vmax.f32 %v549, %v602
        %v635 = vmax.f32 %v551, %v603
        %v636 = vmax.f32 %v553, %v604
        %v637 = vmax.f32 %v557, %v605
        %v638 = vmax.f32 %v559, %v606
        %v639 = vmax.f32 %v561, %v607
        %v640 = vmax.f32 %v563, %v608
        %v641 = vmax.f32 %v567, %v609
        %v642 = vmax.f32 %v569, %v610
        %v643 = vmax.f32 %v571, %v611
        %v644 = vmax.f32 %v573, %v612
        %v645 = vmax.f32 %v577, %v613
        %v646 = vmax.f32 %v579, %v614
        %v647 = vmax.f32 %v581, %v615
        %v648 = vmax.f32 %v583, %v616
        %v649 = vld [vmem:[%s3] sm:$0xf]
        %v650 = vld [vmem:[%s3 + $0x4] sm:$0xf]
        %v651 = vld [vmem:[%s3 + $0x8] sm:$0xf]
        %v652 = vld [vmem:[%s3 + $0xc] sm:$0xf]
        %v653 = vld [vmem:[%s3 + $0x10] sm:$0xf]
        %v654 = vld [vmem:[%s3 + $0x14] sm:$0xf]
        %v655 = vld [vmem:[%s3 + $0x18] sm:$0xf]
        %v656 = vld [vmem:[%s3 + $0x1c] sm:$0xf]
        %v657 = vld [vmem:[%s3 + $0x20] sm:$0xf]
        %v658 = vld [vmem:[%s3 + $0x24] sm:$0xf]
        %v659 = vld [vmem:[%s3 + $0x28] sm:$0xf]
        %v660 = vld [vmem:[%s3 + $0x2c] sm:$0xf]
        %v661 = vld [vmem:[%s3 + $0x30] sm:$0xf]
        %v662 = vld [vmem:[%s3 + $0x34] sm:$0xf]
        %v663 = vld [vmem:[%s3 + $0x38] sm:$0xf]
        %v664 = vld [vmem:[%s3 + $0x3c] sm:$0xf]
        %v665 = vpack.c.bf16 %v619, %v617
        %v666 = vpack.c.bf16 %v620, %v618
        %v667 = vpack.c.bf16 %v623, %v621
        %v668 = vpack.c.bf16 %v624, %v622
        %v669 = vpack.c.bf16 %v627, %v625
        %v670 = vpack.c.bf16 %v628, %v626
        %v671 = vpack.c.bf16 %v631, %v629
        %v672 = vpack.c.bf16 %v632, %v630
        %v673 = vpack.c.bf16 %v635, %v633
        %v674 = vpack.c.bf16 %v636, %v634
        %v675 = vpack.c.bf16 %v639, %v637
        %v676 = vpack.c.bf16 %v640, %v638
        %v677 = vpack.c.bf16 %v643, %v641
        %v678 = vpack.c.bf16 %v644, %v642
        %v679 = vpack.c.bf16 %v647, %v645
        %v680 = vpack.c.bf16 %v648, %v646
        %v681 = vld [vmem:[%s4] sm:$0xff]
        %v682 = vld [vmem:[%s4 + $0x8] sm:$0xff]
        %v683 = vld [vmem:[%s4 + $0x10] sm:$0xff]
        %v684 = vld [vmem:[%s4 + $0x18] sm:$0xff]
        %v685 = vld [vmem:[%s4 + $0x20] sm:$0xff]
        %v686 = vld [vmem:[%s4 + $0x28] sm:$0xff]
        %v687 = vld [vmem:[%s4 + $0x30] sm:$0xff]
        %v688 = vld [vmem:[%s4 + $0x38] sm:$0xff]
        %v689 = vld [vmem:[%s4 + $0x40] sm:$0xff]
        %v690 = vld [vmem:[%s4 + $0x48] sm:$0xff]
        %v691 = vld [vmem:[%s4 + $0x50] sm:$0xff]
        %v692 = vld [vmem:[%s4 + $0x58] sm:$0xff]
        %v693 = vld [vmem:[%s4 + $0x60] sm:$0xff]
        %v694 = vld [vmem:[%s4 + $0x68] sm:$0xff]
        %v695 = vld [vmem:[%s4 + $0x70] sm:$0xff]
        %v696 = vld [vmem:[%s4 + $0x78] sm:$0xff]
        %698 = vset.pattern.permute.xlu0 0
        %699 = vperm.xlu0 %698, %v681
        %v700 = vpop.permute.xlu0 %699
        %703 = vset.pattern.permute.xlu0 0
        %704 = vperm.xlu0 %703, %v682
        %v705 = vpop.permute.xlu0 %704
        %708 = vset.pattern.permute.xlu0 0
        %709 = vperm.xlu0 %708, %v683
        %v710 = vpop.permute.xlu0 %709
        %713 = vset.pattern.permute.xlu0 0
        %714 = vperm.xlu0 %713, %v684
        %v715 = vpop.permute.xlu0 %714
        %718 = vset.pattern.permute.xlu0 0
        %719 = vperm.xlu0 %718, %v685
        %v720 = vpop.permute.xlu0 %719
        %723 = vset.pattern.permute.xlu0 0
        %724 = vperm.xlu0 %723, %v686
        %v725 = vpop.permute.xlu0 %724
        %728 = vset.pattern.permute.xlu0 0
        %729 = vperm.xlu0 %728, %v687
        %v730 = vpop.permute.xlu0 %729
        %733 = vset.pattern.permute.xlu0 0
        %734 = vperm.xlu0 %733, %v688
        %v735 = vpop.permute.xlu0 %734
        %738 = vset.pattern.permute.xlu0 0
        %739 = vperm.xlu0 %738, %v689
        %v740 = vpop.permute.xlu0 %739
        %743 = vset.pattern.permute.xlu0 0
        %744 = vperm.xlu0 %743, %v690
        %v745 = vpop.permute.xlu0 %744
        %748 = vset.pattern.permute.xlu0 0
        %749 = vperm.xlu0 %748, %v691
        %v750 = vpop.permute.xlu0 %749
        %753 = vset.pattern.permute.xlu0 0
        %754 = vperm.xlu0 %753, %v692
        %v755 = vpop.permute.xlu0 %754
        %758 = vset.pattern.permute.xlu0 0
        %759 = vperm.xlu0 %758, %v693
        %v760 = vpop.permute.xlu0 %759
        %763 = vset.pattern.permute.xlu0 0
        %764 = vperm.xlu0 %763, %v694
        %v765 = vpop.permute.xlu0 %764
        %768 = vset.pattern.permute.xlu0 0
        %769 = vperm.xlu0 %768, %v695
        %v770 = vpop.permute.xlu0 %769
        %773 = vset.pattern.permute.xlu0 0
        %774 = vperm.xlu0 %773, %v696
        %v775 = vpop.permute.xlu0 %774
        %v793 = vunpack.c.l.b16 %v649
        %v794 = vunpack.c.l.b16 %v650
        %v795 = vunpack.c.l.b16 %v651
        %v796 = vunpack.c.l.b16 %v652
        %v797 = vunpack.c.l.b16 %v653
        %v798 = vunpack.c.l.b16 %v654
        %v799 = vunpack.c.l.b16 %v655
        %v800 = vunpack.c.l.b16 %v656
        %v801 = vunpack.c.l.b16 %v657
        %v802 = vunpack.c.l.b16 %v658
        %v803 = vunpack.c.l.b16 %v659
        %v804 = vunpack.c.l.b16 %v660
        %v805 = vunpack.c.l.b16 %v661
        %v806 = vunpack.c.l.b16 %v662
        %v807 = vunpack.c.l.b16 %v663
        %v808 = vunpack.c.l.b16 %v664
        %v809 = vpack.c.b16 %v794, %v793
        %v810 = vpack.c.b16 %v796, %v795
        %v811 = vpack.c.b16 %v798, %v797
        %v812 = vpack.c.b16 %v800, %v799
        %v813 = vpack.c.b16 %v802, %v801
        %v814 = vpack.c.b16 %v804, %v803
        %v815 = vpack.c.b16 %v806, %v805
        %v816 = vpack.c.b16 %v808, %v807
        %825 = vmatprep.subr.bf16.mxu0 %v666
        %826 = vmatpush1.bf16.msra.mxu0 %v665
        %827 = vmatprep.subr.bf16.mxu0 %v668
        %828 = vmatpush1.bf16.msra.mxu0 %v667
        %829 = vmatprep.subr.bf16.mxu0 %v670
        %830 = vmatpush1.bf16.msra.mxu0 %v669
        %831 = vmatprep.subr.bf16.mxu0 %v672
        %832 = vmatpush1.bf16.msra.mxu0 %v671
        %833 = vmatprep.subr.bf16.mxu0 %v674
        %834 = vmatpush1.bf16.msra.mxu0 %v673
        %835 = vmatprep.subr.bf16.mxu0 %v676
        %836 = vmatpush1.bf16.msra.mxu0 %v675
        %837 = vmatprep.subr.bf16.mxu0 %v678
        %838 = vmatpush1.bf16.msra.mxu0 %v677
        %839 = vmatprep.subr.bf16.mxu0 %v680
        %840 = vmatpush1.bf16.msra.mxu0 %v679
        %841 = vmatprep.subr.bf16.mxu0 0
        %842 = vmatpush1.bf16.msra.mxu0 0
        %843 = vmatprep.subr.bf16.mxu0 0
        %844 = vmatpush1.bf16.msra.mxu0 0
        %845 = vmatprep.subr.bf16.mxu0 0
        %846 = vmatpush1.bf16.msra.mxu0 0
        %847 = vmatprep.subr.bf16.mxu0 0
        %848 = vmatpush1.bf16.msra.mxu0 0
        %849 = vmatprep.subr.bf16.mxu0 0
        %850 = vmatpush1.bf16.msra.mxu0 0
        %851 = vmatprep.subr.bf16.mxu0 0
        %852 = vmatpush1.bf16.msra.mxu0 0
        %853 = vmatprep.subr.bf16.mxu0 0
        %854 = vmatpush1.bf16.msra.mxu0 0
        %855 = vmatprep.subr.bf16.mxu0 0
        %856 = vmatpush1.bf16.msra.mxu0 0
        %857 = vmatprep.mubr.bf16.mxu0 0
        %858 = vmatmul.mubr.bf16.gmra.mrb[0].mxu0 %v809
        %v859 = vpop.f32.mrb[0].mxu0
        %v860 = vadd.f32 %v700, %v859
        %v861 = vpop.f32.mrb[0].mxu0
        %v862 = vadd.f32 %v700, %v861
        %v863 = vpop.f32.mrb[0].mxu0
        %v864 = vadd.f32 %v705, %v863
        %v865 = vpop.f32.mrb[0].mxu0
        %v866 = vadd.f32 %v705, %v865
        %867 = vmatprep.mubr.bf16.mxu0 0
        %868 = vmatmul.mubr.bf16.gmra.mrb[0].mxu0 %v810
        %v869 = vpop.f32.mrb[0].mxu0
        %v870 = vadd.f32 %v710, %v869
        %v871 = vpop.f32.mrb[0].mxu0
        %v872 = vadd.f32 %v710, %v871
        %v873 = vpop.f32.mrb[0].mxu0
        %v874 = vadd.f32 %v715, %v873
        %v875 = vpop.f32.mrb[0].mxu0
        %v876 = vadd.f32 %v715, %v875
        %877 = vmatprep.mubr.bf16.mxu0 0
        %878 = vmatmul.mubr.bf16.gmra.mrb[0].mxu0 %v811
        %v879 = vpop.f32.mrb[0].mxu0
        %v880 = vadd.f32 %v720, %v879
        %v881 = vpop.f32.mrb[0].mxu0
        %v882 = vadd.f32 %v720, %v881
        %v883 = vpop.f32.mrb[0].mxu0
        %v884 = vadd.f32 %v725, %v883
        %v885 = vpop.f32.mrb[0].mxu0
        %v886 = vadd.f32 %v725, %v885
        %887 = vmatprep.mubr.bf16.mxu0 0
        %888 = vmatmul.mubr.bf16.gmra.mrb[0].mxu0 %v812
        %v889 = vpop.f32.mrb[0].mxu0
        %v890 = vadd.f32 %v730, %v889
        %v891 = vpop.f32.mrb[0].mxu0
        %v892 = vadd.f32 %v730, %v891
        %v893 = vpop.f32.mrb[0].mxu0
        %v894 = vadd.f32 %v735, %v893
        %v895 = vpop.f32.mrb[0].mxu0
        %v896 = vadd.f32 %v735, %v895
        %897 = vmatprep.mubr.bf16.mxu0 0
        %898 = vmatmul.mubr.bf16.gmra.mrb[0].mxu0 %v813
        %v899 = vpop.f32.mrb[0].mxu0
        %v900 = vadd.f32 %v740, %v899
        %v901 = vpop.f32.mrb[0].mxu0
        %v902 = vadd.f32 %v740, %v901
        %v903 = vpop.f32.mrb[0].mxu0
        %v904 = vadd.f32 %v745, %v903
        %v905 = vpop.f32.mrb[0].mxu0
        %v906 = vadd.f32 %v745, %v905
        %907 = vmatprep.mubr.bf16.mxu0 0
        %908 = vmatmul.mubr.bf16.gmra.mrb[0].mxu0 %v814
        %v909 = vpop.f32.mrb[0].mxu0
        %v910 = vadd.f32 %v750, %v909
        %v911 = vpop.f32.mrb[0].mxu0
        %v912 = vadd.f32 %v750, %v911
        %v913 = vpop.f32.mrb[0].mxu0
        %v914 = vadd.f32 %v755, %v913
        %v915 = vpop.f32.mrb[0].mxu0
        %v916 = vadd.f32 %v755, %v915
        %917 = vmatprep.mubr.bf16.mxu0 0
        %918 = vmatmul.mubr.bf16.gmra.mrb[0].mxu0 %v815
        %v919 = vpop.f32.mrb[0].mxu0
        %v920 = vadd.f32 %v760, %v919
        %v921 = vpop.f32.mrb[0].mxu0
        %v922 = vadd.f32 %v760, %v921
        %v923 = vpop.f32.mrb[0].mxu0
        %v924 = vadd.f32 %v765, %v923
        %v925 = vpop.f32.mrb[0].mxu0
        %v926 = vadd.f32 %v765, %v925
        %927 = vmatprep.mubr.bf16.mxu0 0
        %928 = vmatmul.mubr.bf16.gmra.mrb[0].mxu0 %v816
        %v929 = vpop.f32.mrb[0].mxu0
        %v930 = vadd.f32 %v770, %v929
        %v931 = vpop.f32.mrb[0].mxu0
        %v932 = vadd.f32 %v770, %v931
        %v933 = vpop.f32.mrb[0].mxu0
        %v934 = vadd.f32 %v775, %v933
        %v935 = vpop.f32.mrb[0].mxu0
        %v936 = vadd.f32 %v775, %v935
        %937 = vdwg.mxu0
        %v938 = vadd.f32 %v860, %v264
        %v939 = vadd.f32 %v862, %v265
        %v940 = vadd.f32 %v864, %v266
        %v941 = vadd.f32 %v866, %v267
        %v942 = vadd.f32 %v870, %v268
        %v943 = vadd.f32 %v872, %v269
        %v944 = vadd.f32 %v874, %v270
        %v945 = vadd.f32 %v876, %v271
        %v946 = vadd.f32 %v880, %v272
        %v947 = vadd.f32 %v882, %v273
        %v948 = vadd.f32 %v884, %v274
        %v949 = vadd.f32 %v886, %v275
        %v950 = vadd.f32 %v890, %v276
        %v951 = vadd.f32 %v892, %v277
        %v952 = vadd.f32 %v894, %v278
        %v953 = vadd.f32 %v896, %v279
        %v954 = vadd.f32 %v900, %v280
        %v955 = vadd.f32 %v902, %v281
        %v956 = vadd.f32 %v904, %v282
        %v957 = vadd.f32 %v906, %v283
        %v958 = vadd.f32 %v910, %v284
        %v959 = vadd.f32 %v912, %v285
        %v960 = vadd.f32 %v914, %v286
        %v961 = vadd.f32 %v916, %v287
        %v962 = vadd.f32 %v920, %v288
        %v963 = vadd.f32 %v922, %v289
        %v964 = vadd.f32 %v924, %v290
        %v965 = vadd.f32 %v926, %v291
        %v966 = vadd.f32 %v930, %v292
        %v967 = vadd.f32 %v932, %v293
        %v968 = vadd.f32 %v934, %v294
        %v969 = vadd.f32 %v936, %v295
        %970 = vst [vmem:[%s260] sm:$0xff] %v938
        %971 = vst [vmem:[%s260 + $0x8] sm:$0xff] %v939
        %972 = vst [vmem:[%s260 + $0x10] sm:$0xff] %v940
        %973 = vst [vmem:[%s260 + $0x18] sm:$0xff] %v941
        %974 = vst [vmem:[%s260 + $0x20] sm:$0xff] %v942
        %975 = vst [vmem:[%s260 + $0x28] sm:$0xff] %v943
        %976 = vst [vmem:[%s260 + $0x30] sm:$0xff] %v944
        %977 = vst [vmem:[%s260 + $0x38] sm:$0xff] %v945
        %978 = vst [vmem:[%s260 + $0x40] sm:$0xff] %v946
        %979 = vst [vmem:[%s260 + $0x48] sm:$0xff] %v947
        %980 = vst [vmem:[%s260 + $0x50] sm:$0xff] %v948
        %981 = vst [vmem:[%s260 + $0x58] sm:$0xff] %v949
        %982 = vst [vmem:[%s260 + $0x60] sm:$0xff] %v950
        %983 = vst [vmem:[%s260 + $0x68] sm:$0xff] %v951
        %984 = vst [vmem:[%s260 + $0x70] sm:$0xff] %v952
        %985 = vst [vmem:[%s260 + $0x78] sm:$0xff] %v953
        %986 = vst [vmem:[%s260 + $0x80] sm:$0xff] %v954
        %987 = vst [vmem:[%s260 + $0x88] sm:$0xff] %v955
        %988 = vst [vmem:[%s260 + $0x90] sm:$0xff] %v956
        %989 = vst [vmem:[%s260 + $0x98] sm:$0xff] %v957
        %990 = vst [vmem:[%s260 + $0xa0] sm:$0xff] %v958
        %991 = vst [vmem:[%s260 + $0xa8] sm:$0xff] %v959
        %992 = vst [vmem:[%s260 + $0xb0] sm:$0xff] %v960
        %993 = vst [vmem:[%s260 + $0xb8] sm:$0xff] %v961
        %994 = vst [vmem:[%s260 + $0xc0] sm:$0xff] %v962
        %995 = vst [vmem:[%s260 + $0xc8] sm:$0xff] %v963
        %996 = vst [vmem:[%s260 + $0xd0] sm:$0xff] %v964
        %997 = vst [vmem:[%s260 + $0xd8] sm:$0xff] %v965
        %998 = vst [vmem:[%s260 + $0xe0] sm:$0xff] %v966
        %999 = vst [vmem:[%s260 + $0xe8] sm:$0xff] %v967
        %1000 = vst [vmem:[%s260 + $0xf0] sm:$0xff] %v968
        %1001 = vst [vmem:[%s260 + $0xf8] sm:$0xff] %v969
        %s1002 = sand.u32 %s156, 1
        %s1003 = scalar_lea.sflag [#allocation4], %s1002
        %s1004 = sand.u32 %s156, 1
        %s1005 = smul.addr %s1004, 256
        %s1006 = scalar_lea.vmem [#allocation5], %s1005
        // Predicated region
        $region45: #{tpu_custom_call.1} parent=39 // pred_check
          %p1007 = pneg %p166
        $region46: #{tpu_custom_call.1} parent=39 // pred_check_branch
          %1009 = sbr.rel (%p1007) target = $region48
        $region47: #{tpu_custom_call.1} parent=39 // pred_region
          %s1010 = smul.u32 2, %s27
          %s1012 = ssub.s32 4096, 4096
          %1013 = vsyncadd %s1003, %s1012
          %s1014 = smul.addr %s26, 32
          %s1015 = sadd.s32 %s1010, %s1014
          %s1016 = smul.addr %s1015, 128
          %s1017 = scalar_lea.hbm %s5, %s1016
          %s1018 = sshll.u32 %s1006, 4
          %s1019 = int_to_ptr.vmem [resolvable:$true] %s1018
          %1024 = dma.vmem_to_hbm [thread:$0]  %s1019, 4096, %s1017, %s1003, 256, 256, 16
        $region48: #{tpu_custom_call.1} parent=39 // pred_fallthru
          _
      $region40: #{tpu_custom_call.1} parent=5 // pred_fallthru
        _
      %p1025 = scmp.le.s32.totalorder 2, %s17
      // Predicated region
      $region49: #{tpu_custom_call.1} parent=5 // pred_check
        %p1026 = pneg %p1025
      $region50: #{tpu_custom_call.1} parent=5 // pred_check_branch
        %1028 = sbr.rel (%p1026) target = $region52
      $region51: #{tpu_custom_call.1} parent=5 // pred_region
        %s1029 = ssub.s32 %s17, 2
        // Predicated region
        $region53: #{tpu_custom_call.1} parent=51 // pred_check
          %p1030 = pneg %p172
        $region54: #{tpu_custom_call.1} parent=51 // pred_check_branch
          %1032 = sbr.rel (%p1030) target = $region56
        $region55: #{tpu_custom_call.1} parent=51 // pred_region
          %s1033 = sand.u32 %s157, 1
          %s1034 = scalar_lea.sflag [#allocation4], %s1033
          %s1035 = sand.u32 %s157, 1
          %s1036 = smul.addr %s1035, 256
          %s1037 = scalar_lea.vmem [#allocation5], %s1036
          %1038 = dma.done %s1034, 4096
        $region56: #{tpu_custom_call.1} parent=51 // pred_fallthru
          _
      $region52: #{tpu_custom_call.1} parent=5 // pred_fallthru
        _
    $region6: #{tpu_custom_call.1} parent=1 // loop_footer
      %s21 = sadd.s32 1, %s17
    $region7: #{tpu_custom_call.1} parent=1 // loop_footer_branch
      %16 = sbr.rel target = $region3
    $region8: #{tpu_custom_call.1} parent=1 // loop_exit
      _
    %1039 = vsyncpa [#allocation3], 1
    %s1040 = scalar_lea.sflag [#allocation3], 1
    %1041 = vsyncpa %s1040, 1
    %1042 = vsyncpa [#allocation4], 1
    %s1043 = scalar_lea.sflag [#allocation4], 1
    %1044 = vsyncpa %s1043, 1

</llo_original>
